<compile_context>
chip_gen: v5e
topology: v5e:2x2
jax: 0.10.0
libtpu: 0.0.40
codegen_flags: <defaults>
</compile_context>

<pallas_src>
import functools

import jax
import jax.numpy as jnp
from jax.experimental import pallas as pl
from jax.experimental.pallas import tpu as pltpu

ACT_MODE = 0
NUMDREG_AD = 1
NUMDREG_ID = 2


def _cdiv(a, b):
    return (a + b - 1) // b


def _round_up(n, m):
    return _cdiv(n, m) * m


def _dense(a, w, b, compute_dtype):
    """a @ w + b with f32 accumulation; MXU operands cast to compute_dtype."""
    return (
        jnp.dot(
            a.astype(compute_dtype),
            w.astype(compute_dtype),
            preferred_element_type=jnp.float32,
        )
        + b
    )


def _numdreg_kernel(
    x_ref,
    w1_ref, b1_ref,
    w2_ref, b2_ref,
    w3_ref, b3_ref,
    wh_ref, bh_ref,
    out_ref,
    *, relu_before_sigmoid, r_softmax, r_hi, compute_dtype,
):
    """Fused 4-matmul forward.  Lane layout after the head matmul (width 8):
       lanes 0:3      -> q
       lanes 3:r_hi   -> r logits (softmax'ed or sigmoid'ed in-register)
       lanes r_hi:8   -> zero padding (zero head-weight columns)
    """
    cdt = compute_dtype

    # fc1 + relu                                            (TB, 100)
    h = jnp.maximum(_dense(x_ref[...], w1_ref[...], b1_ref[...], cdt), 0.0)

    # layer 2 + relu: fc2_act (ACT) or fused [fc2_act|fc2_num]  (TB, 50|100)
    h2 = jnp.maximum(_dense(h, w2_ref[...], b2_ref[...], cdt), 0.0)

    # layer 3, block-diag / duplicated, 40 lanes:
    #   lanes 0:20  -> relu            (x_act)
    #   lanes 20:40 -> sigmoid(.)      (x_num)        [numerosity path]
    #               -> sigmoid(relu(.))(sigmoid(x_act)) [act-mode path]
    h3p = _dense(h2, w3_ref[...], b3_ref[...], cdt)                 # (TB, 40)
    lane3 = jax.lax.broadcasted_iota(jnp.int32, h3p.shape, 1)
    sig_in = jnp.maximum(h3p, 0.0) if relu_before_sigmoid else h3p
    h3 = jnp.where(lane3 < 20, jnp.maximum(h3p, 0.0), jax.nn.sigmoid(sig_in))

    # head, block-diag [fc_q ; fc_r-or-fc_q] padded to 8 output lanes (TB, 8)
    head = _dense(h3, wh_ref[...], bh_ref[...], cdt)

    lane = jax.lax.broadcasted_iota(jnp.int32, head.shape, 1)
    is_q = lane < 3
    is_r = jnp.logical_and(lane >= 3, lane < r_hi)

    if r_softmax:
        # Masked softmax over the r lanes only; exact division (rows sum to 1).
        m = jnp.max(jnp.where(is_r, head, jnp.float32(-1e30)),
                    axis=-1, keepdims=True)
        e = jnp.where(is_r, jnp.exp(jnp.where(is_r, head - m, 0.0)), 0.0)
        s = jnp.sum(e, axis=-1, keepdims=True)
        r = e / s
    else:
        r = jnp.where(is_r, jax.nn.sigmoid(head), 0.0)

    # One dense store of the packed [q | r | 0] slab.
    out_ref[...] = jnp.where(is_q, head, r)


def _resident_spec(arr):
    """Full-array block pinned at block (0, 0) for every grid step."""
    assert arr.ndim == 2
    return pl.BlockSpec(arr.shape, lambda i: (0, 0))


def init_params(key, method):
    """Deterministic parameter init; weights stored as (in, out)."""
    r_out = 3 if method == NUMDREG_AD else 1
    dims = {
        "fc1": (200, 100),
        "fc2_act": (100, 50),
        "fc3_act": (50, 20),
        "fc_q": (20, 3),
        "fc2_num": (100, 50),
        "fc3_num": (50, 20),
        "fc_r": (20, r_out),
    }
    params = {}
    for name, (fin, fout) in dims.items():
        key, kw, kb = jax.random.split(key, 3)
        bound = 1.0 / jnp.sqrt(fin)
        params[name + "_w"] = jax.random.uniform(
            kw, (fin, fout), jnp.float32, -bound, bound
        )
        params[name + "_b"] = jax.random.uniform(
            kb, (1, fout), jnp.float32, -bound, bound
        )
    return params


def _prep_operands(params, method, mode, compute_dtype):
    """Build the fused / block-diagonal resident weights (host side, one-time
    in practice).  Weight matmul operands are cast to compute_dtype; biases
    stay f32 (added after f32 accumulation)."""
    f32 = jnp.float32
    cw = lambda w: w.astype(compute_dtype)
    r_out = 3 if (mode == ACT_MODE or method == NUMDREG_AD) else 1

    w1, b1 = params["fc1_w"], params["fc1_b"]

    if mode == ACT_MODE:
        # Prune the unused numerosity-branch tensors entirely.
        w2, b2 = params["fc2_act_w"], params["fc2_act_b"]
        # Duplicate fc3_act -> 40 lanes: lower half relu (x_act), upper half
        # sigmoid(relu) (= sigmoid(x_act)).  No lane slicing / row concat.
        w3 = jnp.concatenate([params["fc3_act_w"], params["fc3_act_w"]], axis=1)
        b3 = jnp.concatenate([params["fc3_act_b"], params["fc3_act_b"]], axis=1)
        wq, bq = params["fc_q_w"], params["fc_q_b"]
        wh = jnp.zeros((40, 8), f32).at[:20, 0:3].set(wq).at[20:, 3:6].set(wq)
        bh = jnp.zeros((1, 8), f32).at[:, 0:3].set(bq).at[:, 3:6].set(bq)
        relu_before_sigmoid = True
    else:
        # Fused [fc2_act | fc2_num]; both branches apply relu.
        w2 = jnp.concatenate([params["fc2_act_w"], params["fc2_num_w"]], axis=1)
        b2 = jnp.concatenate([params["fc2_act_b"], params["fc2_num_b"]], axis=1)
        # Block-diagonal [fc3_act ; fc3_num] -> 40 lanes.
        w3 = (
            jnp.zeros((100, 40), f32)
            .at[:50, :20].set(params["fc3_act_w"])
            .at[50:, 20:].set(params["fc3_num_w"])
        )
        b3 = jnp.concatenate([params["fc3_act_b"], params["fc3_num_b"]], axis=1)
        wq, bq = params["fc_q_w"], params["fc_q_b"]
        wr, br = params["fc_r_w"], params["fc_r_b"]
        wh = (
            jnp.zeros((40, 8), f32)
            .at[:20, 0:3].set(wq)
            .at[20:, 3:3 + r_out].set(wr)
        )
        bh = (
            jnp.zeros((1, 8), f32)
            .at[:, 0:3].set(bq)
            .at[:, 3:3 + r_out].set(br)
        )
        relu_before_sigmoid = False

    operands = [cw(w1), b1.astype(f32), cw(w2), b2.astype(f32),
                cw(w3), b3.astype(f32), cw(wh), bh.astype(f32)]
    return operands, r_out, relu_before_sigmoid


def numdreg_forward(x, params, *, method, mode, tb_max=2048,
                    compute_dtype=jnp.bfloat16):
    B = x.shape[0]
    assert x.shape[1] == 200

    weights, r_out, relu_before_sigmoid = _prep_operands(
        params, method, mode, compute_dtype
    )
    r_softmax = (mode == ACT_MODE) or (method == NUMDREG_AD)

    # ---- balanced batch tiling -------------------------------------------
    # TB = round_up(cdiv(B8, n_tiles), 8); n_tiles forced to an even count
    # >= 2 whenever B8 >= 16 so v7x's second TensorCore always has work and
    # the last tile is never mostly padding.
    B8 = _round_up(B, 8)
    n_tiles = _cdiv(B8, tb_max)
    if B8 >= 16:
        n_tiles = _round_up(max(n_tiles, 2), 2)
    TB = _round_up(_cdiv(B8, n_tiles), 8)
    Bp = TB * n_tiles

    x = x.astype(compute_dtype)           # bf16 default: halves x HBM bytes
    if Bp != B:
        x = jnp.pad(x, ((0, Bp - B), (0, 0)))

    kernel = functools.partial(
        _numdreg_kernel,
        relu_before_sigmoid=relu_before_sigmoid,
        r_softmax=r_softmax,
        r_hi=3 + r_out,
        compute_dtype=compute_dtype,
    )

    in_specs = [pl.BlockSpec((TB, 200), lambda i: (i, 0))] + [
        _resident_spec(a) for a in weights
    ]
    # Narrow 8-lane f32 output slab (32 B/row): [q | r | zero pad].
    out_spec = pl.BlockSpec((TB, 8), lambda i: (i, 0))

    out = pl.pallas_call(
        kernel,
        out_shape=jax.ShapeDtypeStruct((Bp, 8), jnp.float32),
        grid=(Bp // TB,),
        in_specs=in_specs,
        out_specs=out_spec,
        compiler_params=pltpu.CompilerParams(
            dimension_semantics=("parallel",),  # shard batch tiles over TCs (v7x)
        ),
    )(x, *weights)

    q = out[:B, 0:3]
    r = out[:B, 3:3 + r_out]
    return q, r


def numdreg_reference(x, params, *, method, mode):
    relu = lambda v: jnp.maximum(v, 0.0)
    h = relu(x @ params["fc1_w"] + params["fc1_b"])
    x_act = relu(h @ params["fc2_act_w"] + params["fc2_act_b"])
    x_act = relu(x_act @ params["fc3_act_w"] + params["fc3_act_b"])
    q = x_act @ params["fc_q_w"] + params["fc_q_b"]
    if mode == ACT_MODE:
        r = jax.nn.softmax(
            jax.nn.sigmoid(x_act) @ params["fc_q_w"] + params["fc_q_b"], axis=-1
        )
    else:
        x_num = relu(h @ params["fc2_num_w"] + params["fc2_num_b"])
        x_num = jax.nn.sigmoid(x_num @ params["fc3_num_w"] + params["fc3_num_b"])
        logits = x_num @ params["fc_r_w"] + params["fc_r_b"]
        if method == NUMDREG_ID:
            r = jax.nn.sigmoid(logits)
        else:
            r = jax.nn.softmax(logits, axis=-1)
    return q, r


if __name__ == "__main__":
    key = jax.random.PRNGKey(0)

    #          name                                method      mode      B   tb_max  dtype
    configs = [
        ("AD / numerosity (softmax r), f32",       NUMDREG_AD, 1,        8,  2048, jnp.float32),
        ("ID / numerosity (sigmoid r), f32",       NUMDREG_ID, 1,        8,  2048, jnp.float32),
        ("AD / act mode   (softmax r), f32",       NUMDREG_AD, ACT_MODE, 8,  2048, jnp.float32),
        ("ID / act mode   (softmax r), f32",       NUMDREG_ID, ACT_MODE, 8,  2048, jnp.float32),
        ("AD / numerosity, bf16 default, 2 tiles", NUMDREG_AD, 1,        24, 2048, jnp.bfloat16),
        ("ID / act mode, balanced 4-tile grid",    NUMDREG_ID, ACT_MODE, 40, 16,   jnp.float32),
    ]

    for name, method, mode, B, tb_max, cdt in configs:
        key, kx, kp = jax.random.split(key, 3)
        x = jax.random.normal(kx, (B, 200), dtype=jnp.float32)
        params = init_params(kp, method)

        q, r = numdreg_forward(
            x, params, method=method, mode=mode, tb_max=tb_max, compute_dtype=cdt
        )
        jax.block_until_ready((q, r))

        q_ref, r_ref = numdreg_reference(x, params, method=method, mode=mode)
        assert q.shape == q_ref.shape and r.shape == r_ref.shape, name

        if cdt == jnp.float32:
            q_tol = dict(atol=1e-5, rtol=1e-5)
            r_tol = dict(atol=1e-4, rtol=1e-4)   # exact-softmax kernel: tight r check
        else:
            q_tol = dict(atol=5e-2, rtol=5e-2)   # bf16 operands, f32 accumulation
            r_tol = dict(atol=3e-2, rtol=5e-2)

        assert jnp.allclose(q, q_ref, **q_tol), name
        assert jnp.allclose(r, r_ref, **r_tol), name

    print("KERNEL_OK")
</pallas_src>

<mosaic_0001>
module attributes {stable_mosaic.version = 11 : i64} {
  func.func @_numdreg_kernel(%arg0: i32, %arg1: memref<8x200xf32, #tpu.memory_space<vmem>>, %arg2: memref<200x100xf32, #tpu.memory_space<vmem>>, %arg3: memref<1x100xf32, #tpu.memory_space<vmem>>, %arg4: memref<100x100xf32, #tpu.memory_space<vmem>>, %arg5: memref<1x100xf32, #tpu.memory_space<vmem>>, %arg6: memref<100x40xf32, #tpu.memory_space<vmem>>, %arg7: memref<1x40xf32, #tpu.memory_space<vmem>>, %arg8: memref<40x8xf32, #tpu.memory_space<vmem>>, %arg9: memref<1x8xf32, #tpu.memory_space<vmem>>, %arg10: memref<8x8xf32, #tpu.memory_space<vmem>>) attributes {dimension_semantics = [#tpu.dimension_semantics<parallel>], iteration_bounds = array<i64: 1>, scalar_prefetch = 0 : i64, scratch_operands = 0 : i64, tpu.core_type = #tpu.core_type<tc>, window_params = [{transform_indices = @transform_0, window_bounds = array<i64: 8, 200>}, {pipeline_mode = #tpu.pipeline_mode<synchronous>, transform_indices = @transform_1, window_bounds = array<i64: 200, 100>}, {pipeline_mode = #tpu.pipeline_mode<synchronous>, transform_indices = @transform_2, window_bounds = array<i64: 1, 100>}, {pipeline_mode = #tpu.pipeline_mode<synchronous>, transform_indices = @transform_3, window_bounds = array<i64: 100, 100>}, {pipeline_mode = #tpu.pipeline_mode<synchronous>, transform_indices = @transform_4, window_bounds = array<i64: 1, 100>}, {pipeline_mode = #tpu.pipeline_mode<synchronous>, transform_indices = @transform_5, window_bounds = array<i64: 100, 40>}, {pipeline_mode = #tpu.pipeline_mode<synchronous>, transform_indices = @transform_6, window_bounds = array<i64: 1, 40>}, {pipeline_mode = #tpu.pipeline_mode<synchronous>, transform_indices = @transform_7, window_bounds = array<i64: 40, 8>}, {pipeline_mode = #tpu.pipeline_mode<synchronous>, transform_indices = @transform_8, window_bounds = array<i64: 1, 8>}, {transform_indices = @transform_9, window_bounds = array<i64: 8, 8>}]} {
    %c0 = arith.constant 0 : index
    %c0_0 = arith.constant 0 : index
    %0 = vector.load %arg1[%c0, %c0_0] : memref<8x200xf32, #tpu.memory_space<vmem>>, vector<8x200xf32>
    %c0_1 = arith.constant 0 : index
    %c0_2 = arith.constant 0 : index
    %1 = vector.load %arg2[%c0_1, %c0_2] : memref<200x100xf32, #tpu.memory_space<vmem>>, vector<200x100xf32>
    %c0_3 = arith.constant 0 : index
    %c0_4 = arith.constant 0 : index
    %2 = vector.load %arg3[%c0_3, %c0_4] : memref<1x100xf32, #tpu.memory_space<vmem>>, vector<1x100xf32>
    %cst = arith.constant dense<0.000000e+00> : vector<8x100xf32>
    %3 = tpu.matmul %0, %1, %cst {dimension_numbers = #tpu.dot_dimension_numbers<[1], [0], [0], [1], [0, 0, 1, 1], [], []>} : vector<8x200xf32>, vector<200x100xf32>, vector<8x100xf32> -> vector<8x100xf32>
    %4 = vector.broadcast %2 : vector<1x100xf32> to vector<8x100xf32>
    %5 = arith.addf %3, %4 : vector<8x100xf32>
    %cst_5 = arith.constant 0.000000e+00 : f32
    %6 = vector.broadcast %cst_5 : f32 to vector<8x100xf32>
    %7 = arith.maximumf %5, %6 : vector<8x100xf32>
    %c0_6 = arith.constant 0 : index
    %c0_7 = arith.constant 0 : index
    %8 = vector.load %arg4[%c0_6, %c0_7] : memref<100x100xf32, #tpu.memory_space<vmem>>, vector<100x100xf32>
    %c0_8 = arith.constant 0 : index
    %c0_9 = arith.constant 0 : index
    %9 = vector.load %arg5[%c0_8, %c0_9] : memref<1x100xf32, #tpu.memory_space<vmem>>, vector<1x100xf32>
    %cst_10 = arith.constant dense<0.000000e+00> : vector<8x100xf32>
    %10 = tpu.matmul %7, %8, %cst_10 {dimension_numbers = #tpu.dot_dimension_numbers<[1], [0], [0], [1], [0, 0, 1, 1], [], []>} : vector<8x100xf32>, vector<100x100xf32>, vector<8x100xf32> -> vector<8x100xf32>
    %11 = vector.broadcast %9 : vector<1x100xf32> to vector<8x100xf32>
    %12 = arith.addf %10, %11 : vector<8x100xf32>
    %cst_11 = arith.constant 0.000000e+00 : f32
    %13 = vector.broadcast %cst_11 : f32 to vector<8x100xf32>
    %14 = arith.maximumf %12, %13 : vector<8x100xf32>
    %c0_12 = arith.constant 0 : index
    %c0_13 = arith.constant 0 : index
    %15 = vector.load %arg6[%c0_12, %c0_13] : memref<100x40xf32, #tpu.memory_space<vmem>>, vector<100x40xf32>
    %c0_14 = arith.constant 0 : index
    %c0_15 = arith.constant 0 : index
    %16 = vector.load %arg7[%c0_14, %c0_15] : memref<1x40xf32, #tpu.memory_space<vmem>>, vector<1x40xf32>
    %cst_16 = arith.constant dense<0.000000e+00> : vector<8x40xf32>
    %17 = tpu.matmul %14, %15, %cst_16 {dimension_numbers = #tpu.dot_dimension_numbers<[1], [0], [0], [1], [0, 0, 1, 1], [], []>} : vector<8x100xf32>, vector<100x40xf32>, vector<8x40xf32> -> vector<8x40xf32>
    %18 = vector.broadcast %16 : vector<1x40xf32> to vector<8x40xf32>
    %19 = arith.addf %17, %18 : vector<8x40xf32>
    %20 = tpu.iota {dimensions = array<i32: 1>} : vector<8x40xi32>
    %c20_i32 = arith.constant 20 : i32
    %21 = vector.broadcast %c20_i32 : i32 to vector<8x40xi32>
    %22 = arith.cmpi slt, %20, %21 : vector<8x40xi32>
    %cst_17 = arith.constant 0.000000e+00 : f32
    %23 = vector.broadcast %cst_17 : f32 to vector<8x40xf32>
    %24 = arith.maximumf %19, %23 : vector<8x40xf32>
    %25 = arith.negf %19 : vector<8x40xf32>
    %26 = math.exp %25 : vector<8x40xf32>
    %cst_18 = arith.constant 1.000000e+00 : f32
    %27 = vector.broadcast %cst_18 : f32 to vector<8x40xf32>
    %28 = arith.addf %27, %26 : vector<8x40xf32>
    %29 = arith.divf %27, %28 : vector<8x40xf32>
    %30 = arith.select %22, %24, %29 : vector<8x40xi1>, vector<8x40xf32>
    %c0_19 = arith.constant 0 : index
    %c0_20 = arith.constant 0 : index
    %31 = vector.load %arg8[%c0_19, %c0_20] : memref<40x8xf32, #tpu.memory_space<vmem>>, vector<40x8xf32>
    %c0_21 = arith.constant 0 : index
    %c0_22 = arith.constant 0 : index
    %32 = vector.load %arg9[%c0_21, %c0_22] : memref<1x8xf32, #tpu.memory_space<vmem>>, vector<1x8xf32>
    %cst_23 = arith.constant dense<0.000000e+00> : vector<8x8xf32>
    %33 = tpu.matmul %30, %31, %cst_23 {dimension_numbers = #tpu.dot_dimension_numbers<[1], [0], [0], [1], [0, 0, 1, 1], [], []>} : vector<8x40xf32>, vector<40x8xf32>, vector<8x8xf32> -> vector<8x8xf32>
    %34 = vector.broadcast %32 : vector<1x8xf32> to vector<8x8xf32>
    %35 = arith.addf %33, %34 : vector<8x8xf32>
    %36 = tpu.iota {dimensions = array<i32: 1>} : vector<8x8xi32>
    %c3_i32 = arith.constant 3 : i32
    %37 = vector.broadcast %c3_i32 : i32 to vector<8x8xi32>
    %38 = arith.cmpi slt, %36, %37 : vector<8x8xi32>
    %c3_i32_24 = arith.constant 3 : i32
    %39 = vector.broadcast %c3_i32_24 : i32 to vector<8x8xi32>
    %40 = arith.cmpi sge, %36, %39 : vector<8x8xi32>
    %c6_i32 = arith.constant 6 : i32
    %41 = vector.broadcast %c6_i32 : i32 to vector<8x8xi32>
    %42 = arith.cmpi slt, %36, %41 : vector<8x8xi32>
    %43 = arith.andi %40, %42 : vector<8x8xi1>
    %cst_25 = arith.constant -1.000000e+30 : f32
    %44 = vector.broadcast %cst_25 : f32 to vector<8x8xf32>
    %45 = arith.select %43, %35, %44 : vector<8x8xi1>, vector<8x8xf32>
    %cst_26 = arith.constant dense<0xFF800000> : vector<8xf32>
    %46 = vector.multi_reduction <maximumf>, %45, %cst_26 [1] : vector<8x8xf32> to vector<8xf32>
    %47 = vector.shape_cast %46 : vector<8xf32> to vector<8x1xf32>
    %48 = vector.broadcast %47 : vector<8x1xf32> to vector<8x8xf32>
    %49 = arith.subf %35, %48 : vector<8x8xf32>
    %cst_27 = arith.constant 0.000000e+00 : f32
    %50 = vector.broadcast %cst_27 : f32 to vector<8x8xf32>
    %51 = arith.select %43, %49, %50 : vector<8x8xi1>, vector<8x8xf32>
    %52 = math.exp %51 : vector<8x8xf32>
    %cst_28 = arith.constant 0.000000e+00 : f32
    %53 = vector.broadcast %cst_28 : f32 to vector<8x8xf32>
    %54 = arith.select %43, %52, %53 : vector<8x8xi1>, vector<8x8xf32>
    %cst_29 = arith.constant dense<0.000000e+00> : vector<8xf32>
    %55 = vector.multi_reduction <add>, %54, %cst_29 [1] : vector<8x8xf32> to vector<8xf32>
    %56 = vector.shape_cast %55 : vector<8xf32> to vector<8x1xf32>
    %57 = vector.broadcast %56 : vector<8x1xf32> to vector<8x8xf32>
    %58 = arith.divf %54, %57 : vector<8x8xf32>
    %59 = arith.select %38, %35, %58 : vector<8x8xi1>, vector<8x8xf32>
    %c0_30 = arith.constant 0 : index
    %c0_31 = arith.constant 0 : index
    %60 = vector.load %arg10[%c0_30, %c0_31] : memref<8x8xf32, #tpu.memory_space<vmem>>, vector<8x8xf32>
    tpu.vector_store %arg10[%c0_30, %c0_31], %59 {strides = array<i32>} : memref<8x8xf32, #tpu.memory_space<vmem>>, vector<8x8xf32>,
    return
  }
  func.func @transform_0(%arg0: i32) -> (i32, i32) {
    %c0_i32 = arith.constant 0 : i32
    %c0_i32_0 = arith.constant 0 : i32
    return %arg0, %c0_i32 : i32, i32
  }
  func.func @transform_1(%arg0: i32) -> (i32, i32) {
    %c0_i32 = arith.constant 0 : i32
    %c0_i32_0 = arith.constant 0 : i32
    %c0_i32_1 = arith.constant 0 : i32
    return %c0_i32, %c0_i32_0 : i32, i32
  }
  func.func @transform_2(%arg0: i32) -> (i32, i32) {
    %c0_i32 = arith.constant 0 : i32
    %c0_i32_0 = arith.constant 0 : i32
    %c0_i32_1 = arith.constant 0 : i32
    return %c0_i32, %c0_i32_0 : i32, i32
  }
  func.func @transform_3(%arg0: i32) -> (i32, i32) {
    %c0_i32 = arith.constant 0 : i32
    %c0_i32_0 = arith.constant 0 : i32
    %c0_i32_1 = arith.constant 0 : i32
    return %c0_i32, %c0_i32_0 : i32, i32
  }
  func.func @transform_4(%arg0: i32) -> (i32, i32) {
    %c0_i32 = arith.constant 0 : i32
    %c0_i32_0 = arith.constant 0 : i32
    %c0_i32_1 = arith.constant 0 : i32
    return %c0_i32, %c0_i32_0 : i32, i32
  }
  func.func @transform_5(%arg0: i32) -> (i32, i32) {
    %c0_i32 = arith.constant 0 : i32
    %c0_i32_0 = arith.constant 0 : i32
    %c0_i32_1 = arith.constant 0 : i32
    return %c0_i32, %c0_i32_0 : i32, i32
  }
  func.func @transform_6(%arg0: i32) -> (i32, i32) {
    %c0_i32 = arith.constant 0 : i32
    %c0_i32_0 = arith.constant 0 : i32
    %c0_i32_1 = arith.constant 0 : i32
    return %c0_i32, %c0_i32_0 : i32, i32
  }
  func.func @transform_7(%arg0: i32) -> (i32, i32) {
    %c0_i32 = arith.constant 0 : i32
    %c0_i32_0 = arith.constant 0 : i32
    %c0_i32_1 = arith.constant 0 : i32
    return %c0_i32, %c0_i32_0 : i32, i32
  }
  func.func @transform_8(%arg0: i32) -> (i32, i32) {
    %c0_i32 = arith.constant 0 : i32
    %c0_i32_0 = arith.constant 0 : i32
    %c0_i32_1 = arith.constant 0 : i32
    return %c0_i32, %c0_i32_0 : i32, i32
  }
  func.func @transform_9(%arg0: i32) -> (i32, i32) {
    %c0_i32 = arith.constant 0 : i32
    %c0_i32_0 = arith.constant 0 : i32
    return %arg0, %c0_i32 : i32, i32
  }
}

</mosaic_0001>

<llo_original>
// kernel: tpu_custom_call.1
$region0: #{tpu_custom_call.1}
  #allocation0 [shape = 'u32[]', space=smem, size = 0x4, offset = 0x4, fixed_abs, tag = 'smem constant byte address 0x4 - core index']
  #allocation1 [shape = 'u32[72,128]{1,0:T(1,128)}', space=vmem, size = 0x9000, scoped, tag = 'internal scratch']
  %s0 = inlined_call_operand.vmem [shape: f32[8,200], index: 0, kind: input, shape index: {}]
  %s1 = inlined_call_operand.hbm [shape: f32[200,100], index: 1, kind: input, shape index: {}]
  %s2 = inlined_call_operand.vmem [shape: f32[1,100], index: 2, kind: input, shape index: {}]
  %s3 = inlined_call_operand.vmem [shape: f32[100,100], index: 3, kind: input, shape index: {}]
  %s4 = inlined_call_operand.vmem [shape: f32[1,100], index: 4, kind: input, shape index: {}]
  %s5 = inlined_call_operand.vmem [shape: f32[100,40], index: 5, kind: input, shape index: {}]
  %s6 = inlined_call_operand.vmem [shape: f32[1,40], index: 6, kind: input, shape index: {}]
  %s7 = inlined_call_operand.vmem [shape: f32[40,8], index: 7, kind: input, shape index: {}]
  %s8 = inlined_call_operand.vmem [shape: f32[1,8], index: 8, kind: input, shape index: {}]
  %s9 = inlined_call_operand.hbm [shape: f32[8,8], index: 9, kind: output, shape index: {}]
  %s10 = sld [smem:[#allocation0]]
  $region50: #{tpu_custom_call.1} parent=0
    _
  %s12 = ssub.s32 1, %s10
  %s13 = scalar_select 0, %s12, %s10
  $region1: #{tpu_custom_call.1} parent=0
    #allocation2 [shape = 'u8[102400]{0}', space=vmem, size = 0x19000, scoped, tag = 'input window, operand 1, single buffered']
    #allocation3 [shape = 's32[1]{0}', space=sflag, size = 0x4, scoped, tag = 'scoped memory for tpu_custom_call.1']
    #allocation4 [shape = 's32[1]{0}', space=sflag, size = 0x4, scoped, tag = 'scoped memory for tpu_custom_call.1']
    #allocation5 [shape = 'u8[4096]{0}', space=vmem, size = 0x1000, scoped, tag = 'output window, operand 0, single buffered']
    %14 = vsyncpa [#allocation3], 0
    %15 = vsyncpa [#allocation4], 0
    // Predicated region
    $region2: #{tpu_custom_call.1} parent=1 // pred_check
      _
    $region3: #{tpu_custom_call.1} parent=1 // pred_check_branch
      %17 = sbr.rel (0) target = $region5
    $region4: #{tpu_custom_call.1} parent=1 // pred_region
      _
    $region5: #{tpu_custom_call.1} parent=1 // pred_fallthru
      _
    // Predicated region
    $region6: #{tpu_custom_call.1} parent=1 // pred_check
      _
    $region7: #{tpu_custom_call.1} parent=1 // pred_check_branch
      %19 = sbr.rel (0) target = $region9
    $region8: #{tpu_custom_call.1} parent=1 // pred_region
      %21 = vsyncadd [#allocation3], 0
      %s22 = sshll.u32 %s1, 4
      %s23 = int_to_ptr.hbm [resolvable:$true] %s22
      %s24 = sshll.u32 [#allocation2], 4
      %s25 = int_to_ptr.vmem [resolvable:$true] %s24
      %30 = dma.hbm_to_vmem [thread:$0]  %s23, 3200, %s25, [#allocation3], 128, 128, 8
    $region9: #{tpu_custom_call.1} parent=1 // pred_fallthru
      _
    // Predicated region
    $region10: #{tpu_custom_call.1} parent=1 // pred_check
      _
    $region11: #{tpu_custom_call.1} parent=1 // pred_check_branch
      %32 = sbr.rel (0) target = $region13
    $region12: #{tpu_custom_call.1} parent=1 // pred_region
      _
    $region13: #{tpu_custom_call.1} parent=1 // pred_fallthru
      _
    // Predicated region
    $region14: #{tpu_custom_call.1} parent=1 // pred_check
      _
    $region15: #{tpu_custom_call.1} parent=1 // pred_check_branch
      %34 = sbr.rel (0) target = $region17
    $region16: #{tpu_custom_call.1} parent=1 // pred_region
      _
    $region17: #{tpu_custom_call.1} parent=1 // pred_fallthru
      _
    // Predicated region
    $region18: #{tpu_custom_call.1} parent=1 // pred_check
      _
    $region19: #{tpu_custom_call.1} parent=1 // pred_check_branch
      %36 = sbr.rel (0) target = $region21
    $region20: #{tpu_custom_call.1} parent=1 // pred_region
      _
    $region21: #{tpu_custom_call.1} parent=1 // pred_fallthru
      _
    // Predicated region
    $region22: #{tpu_custom_call.1} parent=1 // pred_check
      _
    $region23: #{tpu_custom_call.1} parent=1 // pred_check_branch
      %38 = sbr.rel (0) target = $region25
    $region24: #{tpu_custom_call.1} parent=1 // pred_region
      _
    $region25: #{tpu_custom_call.1} parent=1 // pred_fallthru
      _
    // Predicated region
    $region26: #{tpu_custom_call.1} parent=1 // pred_check
      _
    $region27: #{tpu_custom_call.1} parent=1 // pred_check_branch
      %40 = sbr.rel (0) target = $region29
    $region28: #{tpu_custom_call.1} parent=1 // pred_region
      _
    $region29: #{tpu_custom_call.1} parent=1 // pred_fallthru
      _
    // Predicated region
    $region30: #{tpu_custom_call.1} parent=1 // pred_check
      _
    $region31: #{tpu_custom_call.1} parent=1 // pred_check_branch
      %42 = sbr.rel (0) target = $region33
    $region32: #{tpu_custom_call.1} parent=1 // pred_region
      _
    $region33: #{tpu_custom_call.1} parent=1 // pred_fallthru
      _
    // Predicated region
    $region34: #{tpu_custom_call.1} parent=1 // pred_check
      _
    $region35: #{tpu_custom_call.1} parent=1 // pred_check_branch
      %44 = sbr.rel (0) target = $region37
    $region36: #{tpu_custom_call.1} parent=1 // pred_region
      _
    $region37: #{tpu_custom_call.1} parent=1 // pred_fallthru
      _
    // Predicated region
    $region38: #{tpu_custom_call.1} parent=1 // pred_check
      _
    $region39: #{tpu_custom_call.1} parent=1 // pred_check_branch
      %46 = sbr.rel (0) target = $region41
    $region40: #{tpu_custom_call.1} parent=1 // pred_region
      %48 = dma.done [#allocation3], 3200
    $region41: #{tpu_custom_call.1} parent=1 // pred_fallthru
      _
    %v49 = vld [vmem:[%s0] sm:$0xff]
    %v50 = vld [vmem:[%s0 + $0x8] sm:$0xff]
    %v51 = vld [vmem:[#allocation2] sm:$0xff]
    %v52 = vld [vmem:[#allocation2 + $0x8] sm:$0xff]
    %v53 = vld [vmem:[#allocation2 + $0x10] sm:$0xff]
    %v54 = vld [vmem:[#allocation2 + $0x18] sm:$0xff]
    %v55 = vld [vmem:[#allocation2 + $0x20] sm:$0xff]
    %v56 = vld [vmem:[#allocation2 + $0x28] sm:$0xff]
    %v57 = vld [vmem:[#allocation2 + $0x30] sm:$0xff]
    %v58 = vld [vmem:[#allocation2 + $0x38] sm:$0xff]
    %v59 = vld [vmem:[#allocation2 + $0x40] sm:$0xff]
    %v60 = vld [vmem:[#allocation2 + $0x48] sm:$0xff]
    %v61 = vld [vmem:[#allocation2 + $0x50] sm:$0xff]
    %v62 = vld [vmem:[#allocation2 + $0x58] sm:$0xff]
    %v63 = vld [vmem:[#allocation2 + $0x60] sm:$0xff]
    %v64 = vld [vmem:[#allocation2 + $0x68] sm:$0xff]
    %v65 = vld [vmem:[#allocation2 + $0x70] sm:$0xff]
    %v66 = vld [vmem:[#allocation2 + $0x78] sm:$0xff]
    %v67 = vld [vmem:[#allocation2 + $0x80] sm:$0xff]
    %v68 = vld [vmem:[#allocation2 + $0x88] sm:$0xff]
    %v69 = vld [vmem:[#allocation2 + $0x90] sm:$0xff]
    %v70 = vld [vmem:[#allocation2 + $0x98] sm:$0xff]
    %v71 = vld [vmem:[#allocation2 + $0xa0] sm:$0xff]
    %v72 = vld [vmem:[#allocation2 + $0xa8] sm:$0xff]
    %v73 = vld [vmem:[#allocation2 + $0xb0] sm:$0xff]
    %v74 = vld [vmem:[#allocation2 + $0xb8] sm:$0xff]
    %v75 = vld [vmem:[#allocation2 + $0xc0] sm:$0xff]
    %v76 = vld [vmem:[%s2] sm:$0x1]
    %v78 = vperm.slane %v76, 0
    %vm80 = vcmask 588800
    %v82 = vsel %vm80, %v50, 0
    %84 = vmatpush.msra.mxu0 %v66
    %85 = vmatpush.msra.mxu0 %v65
    %86 = vmatpush.msra.mxu0 %v64
    %87 = vmatpush.msra.mxu0 %v63
    %88 = vmatpush.msra.mxu0 %v62
    %89 = vmatpush.msra.mxu0 %v61
    %90 = vmatpush.msra.mxu0 %v60
    %91 = vmatpush.msra.mxu0 %v59
    %92 = vmatpush.msra.mxu0 %v58
    %93 = vmatpush.msra.mxu0 %v57
    %94 = vmatpush.msra.mxu0 %v56
    %95 = vmatpush.msra.mxu0 %v55
    %96 = vmatpush.msra.mxu0 %v54
    %97 = vmatpush.msra.mxu0 %v53
    %98 = vmatpush.msra.mxu0 %v52
    %99 = vmatpush.msra.mxu0 %v51
    %100 = vmatmul.f32.gmra.mxu0 %v49
    %v101 = vpop.f32.mrf.mxu0
    %v102 = vadd.f32 %v78, %v101
    %103 = vdwg.mxu0
    %104 = vmatpush.msra.mxu0 0.0
    %105 = vmatpush.msra.mxu0 0.0
    %106 = vmatpush.msra.mxu0 0.0
    %107 = vmatpush.msra.mxu0 0.0
    %108 = vmatpush.msra.mxu0 0.0
    %109 = vmatpush.msra.mxu0 0.0
    %110 = vmatpush.msra.mxu0 0.0
    %111 = vmatpush.msra.mxu0 %v75
    %112 = vmatpush.msra.mxu0 %v74
    %113 = vmatpush.msra.mxu0 %v73
    %114 = vmatpush.msra.mxu0 %v72
    %115 = vmatpush.msra.mxu0 %v71
    %116 = vmatpush.msra.mxu0 %v70
    %117 = vmatpush.msra.mxu0 %v69
    %118 = vmatpush.msra.mxu0 %v68
    %119 = vmatpush.msra.mxu0 %v67
    %120 = vmatmul.f32.gmra.mxu0 %v82
    %v121 = vpop.f32.mrf.mxu0
    %v122 = vadd.f32 %v102, %v121
    %123 = vdwg.mxu0
    %v124 = vmax.f32 %v122, 0.0
    %v125 = vld [vmem:[%s3] sm:$0xff]
    %v126 = vld [vmem:[%s3 + $0x8] sm:$0xff]
    %v127 = vld [vmem:[%s3 + $0x10] sm:$0xff]
    %v128 = vld [vmem:[%s3 + $0x18] sm:$0xff]
    %v129 = vld [vmem:[%s3 + $0x20] sm:$0xff]
    %v130 = vld [vmem:[%s3 + $0x28] sm:$0xff]
    %v131 = vld [vmem:[%s3 + $0x30] sm:$0xff]
    %v132 = vld [vmem:[%s3 + $0x38] sm:$0xff]
    %v133 = vld [vmem:[%s3 + $0x40] sm:$0xff]
    %v134 = vld [vmem:[%s3 + $0x48] sm:$0xff]
    %v135 = vld [vmem:[%s3 + $0x50] sm:$0xff]
    %v136 = vld [vmem:[%s3 + $0x58] sm:$0xff]
    %v137 = vld [vmem:[%s3 + $0x60] sm:$0xf]
    %v138 = vld [vmem:[%s4] sm:$0x1]
    %v140 = vperm.slane %v138, 0
    %vm142 = vcmask 818176
    %v144 = vsel %vm142, %v124, 0
    %vm146 = vcmask 1043456
    %v148 = vsel %vm146, %v137, 0
    %150 = vmatpush.msra.mxu0 0.0
    %151 = vmatpush.msra.mxu0 0.0
    %152 = vmatpush.msra.mxu0 0.0
    %153 = vmatpush.msra.mxu0 %v148
    %154 = vmatpush.msra.mxu0 %v136
    %155 = vmatpush.msra.mxu0 %v135
    %156 = vmatpush.msra.mxu0 %v134
    %157 = vmatpush.msra.mxu0 %v133
    %158 = vmatpush.msra.mxu0 %v132
    %159 = vmatpush.msra.mxu0 %v131
    %160 = vmatpush.msra.mxu0 %v130
    %161 = vmatpush.msra.mxu0 %v129
    %162 = vmatpush.msra.mxu0 %v128
    %163 = vmatpush.msra.mxu0 %v127
    %164 = vmatpush.msra.mxu0 %v126
    %165 = vmatpush.msra.mxu0 %v125
    %166 = vmatmul.f32.gmra.mxu0 %v144
    %v167 = vpop.f32.mrf.mxu0
    %v168 = vadd.f32 %v140, %v167
    %169 = vdwg.mxu0
    %v170 = vmax.f32 %v168, 0.0
    %v171 = vld [vmem:[%s5] sm:$0xff]
    %v172 = vld [vmem:[%s5 + $0x8] sm:$0xff]
    %v173 = vld [vmem:[%s5 + $0x10] sm:$0xff]
    %v174 = vld [vmem:[%s5 + $0x18] sm:$0xff]
    %v175 = vld [vmem:[%s5 + $0x20] sm:$0xff]
    %v176 = vld [vmem:[%s5 + $0x28] sm:$0xff]
    %v177 = vld [vmem:[%s5 + $0x30] sm:$0xff]
    %v178 = vld [vmem:[%s5 + $0x38] sm:$0xff]
    %v179 = vld [vmem:[%s5 + $0x40] sm:$0xff]
    %v180 = vld [vmem:[%s5 + $0x48] sm:$0xff]
    %v181 = vld [vmem:[%s5 + $0x50] sm:$0xff]
    %v182 = vld [vmem:[%s5 + $0x58] sm:$0xff]
    %v183 = vld [vmem:[%s5 + $0x60] sm:$0xf]
    %v184 = vld [vmem:[%s6] sm:$0x1]
    %v186 = vperm.slane %v184, 0
    %v189 = vsel %vm142, %v170, 0
    %v192 = vsel %vm146, %v183, 0
    %194 = vmatpush.msra.mxu0 0.0
    %195 = vmatpush.msra.mxu0 0.0
    %196 = vmatpush.msra.mxu0 0.0
    %197 = vmatpush.msra.mxu0 %v192
    %198 = vmatpush.msra.mxu0 %v182
    %199 = vmatpush.msra.mxu0 %v181
    %200 = vmatpush.msra.mxu0 %v180
    %201 = vmatpush.msra.mxu0 %v179
    %202 = vmatpush.msra.mxu0 %v178
    %203 = vmatpush.msra.mxu0 %v177
    %204 = vmatpush.msra.mxu0 %v176
    %205 = vmatpush.msra.mxu0 %v175
    %206 = vmatpush.msra.mxu0 %v174
    %207 = vmatpush.msra.mxu0 %v173
    %208 = vmatpush.msra.mxu0 %v172
    %209 = vmatpush.msra.mxu0 %v171
    %210 = vmatmul.f32.gmra.mxu0 %v189
    %v211 = vpop.f32.mrf.mxu0
    %v212 = vadd.f32 %v186, %v211
    %213 = vdwg.mxu0
    %v214 = vlaneseq
    %v215 = vand.u32 %v214, 127
    %vm216 = vcmp.lt.s32.totalorder %v215, 20
    %v217 = vmax.f32 %v212, 0.0
    %v218 = vxor.u32 %v212, 2147483648
    %v219 = vmul.f32 %v218, 1.442695
    %v220 = vpow.pop %v219
    %v221 = vadd.f32 %v220, 1.0
    %v222 = vrcp.pop %v221
    %v223 = vmul.f32 %v221, %v222
    %v224 = vsub.f32 1.0, %v223
    %v225 = vmul.f32 %v222, %v224
    %v226 = vadd.f32 %v222, %v225
    %vm227 = vweird.f32 %v221
    %vm228 = vweird.f32 %v222
    %vm229 = vmor %vm227, %vm228
    %v230 = vsel %vm229, %v222, %v226
    %v231 = vand.u32 2147483647, %v221
    %vm232 = vcmp.eq.f32.partialorder %v231, 8.507059e+37
    %v233 = vand.u32 %v221, 2147483648
    %v234 = vor.u32 1.1754944e-38, %v233
    %v235 = vsel %vm232, %v234, %v230
    %v236 = vmul.f32 1.0, %v235
    %v237 = vsel %vm216, %v217, %v236
    %v238 = vld [vmem:[%s7] sm:$0xff]
    %v239 = vld [vmem:[%s7 + $0x8] sm:$0xff]
    %v240 = vld [vmem:[%s7 + $0x10] sm:$0xff]
    %v241 = vld [vmem:[%s7 + $0x18] sm:$0xff]
    %v242 = vld [vmem:[%s7 + $0x20] sm:$0xff]
    %v243 = vld [vmem:[%s8] sm:$0x1]
    %v245 = vperm.slane %v243, 0
    %vm247 = vcmask 326656
    %v249 = vsel %vm247, %v237, 0
    %251 = vmatpush.msra.mxu0 0.0
    %252 = vmatpush.msra.mxu0 0.0
    %253 = vmatpush.msra.mxu0 0.0
    %254 = vmatpush.msra.mxu0 0.0
    %255 = vmatpush.msra.mxu0 0.0
    %256 = vmatpush.msra.mxu0 0.0
    %257 = vmatpush.msra.mxu0 0.0
    %258 = vmatpush.msra.mxu0 0.0
    %259 = vmatpush.msra.mxu0 0.0
    %260 = vmatpush.msra.mxu0 0.0
    %261 = vmatpush.msra.mxu0 0.0
    %262 = vmatpush.msra.mxu0 %v242
    %263 = vmatpush.msra.mxu0 %v241
    %264 = vmatpush.msra.mxu0 %v240
    %265 = vmatpush.msra.mxu0 %v239
    %266 = vmatpush.msra.mxu0 %v238
    %267 = vmatmul.f32.gmra.mxu0 %v249
    %v268 = vpop.f32.mrf.mxu0
    %v269 = vadd.f32 %v245, %v268
    %270 = vdwg.mxu0
    %vm271 = vcmp.lt.s32.totalorder %v215, 3
    %vm272 = vcmp.ge.s32.totalorder %v215, 3
    %vm273 = vcmp.lt.s32.totalorder %v215, 6
    %vm274 = vmand %vm272, %vm273
    %v275 = vsel %vm274, %v269, -1e+30
    %vm276 = vcmask 64512
    %v277 = vsel %vm276, %v275, -inf
    %278 = vmax.xlane.f32.xlu0 %v277
    %v279 = vpop.xlane.xlu0 %278
    %v280 = vsub.f32 %v269, %v279
    %v281 = vsel %vm274, %v280, 0.0
    %v282 = vmul.f32 %v281, 1.442695
    %v283 = vpow.pop %v282
    %v284 = vsel %vm274, %v283, 0.0
    %v285 = vsel %vm276, %v284, 0.0
    %286 = vadd.xlane.f32.xlu0 %v285
    %v287 = vpop.xlane.xlu0 %286
    %v288 = vrcp.pop %v287
    %v289 = vmul.f32 %v287, %v288
    %v290 = vsub.f32 1.0, %v289
    %v291 = vmul.f32 %v288, %v290
    %v292 = vadd.f32 %v288, %v291
    %vm293 = vweird.f32 %v287
    %vm294 = vweird.f32 %v288
    %vm295 = vmor %vm293, %vm294
    %v296 = vsel %vm295, %v288, %v292
    %v297 = vand.u32 2147483647, %v287
    %vm298 = vcmp.eq.f32.partialorder %v297, 8.507059e+37
    %v299 = vand.u32 %v287, 2147483648
    %v300 = vor.u32 1.1754944e-38, %v299
    %v301 = vsel %vm298, %v300, %v296
    %v302 = vmul.f32 %v284, %v301
    %v303 = vsel %vm271, %v269, %v302
    %304 = vst.msk [vmem:[#allocation5] sm:$0xff] %vm276, %v303
    // Predicated region
    $region42: #{tpu_custom_call.1} parent=1 // pred_check
      _
    $region43: #{tpu_custom_call.1} parent=1 // pred_check_branch
      %306 = sbr.rel (0) target = $region45
    $region44: #{tpu_custom_call.1} parent=1 // pred_region
      %308 = vsyncadd [#allocation4], 0
      %s310 = sshll.u32 [#allocation5], 4
      %s311 = int_to_ptr.vmem [resolvable:$true] %s310
      %s312 = sshll.u32 %s9, 4
      %s313 = int_to_ptr.hbm [resolvable:$true] %s312
      %315 = dma.vmem_to_hbm [thread:$0]  %s311, 128, %s313, [#allocation4]
    $region45: #{tpu_custom_call.1} parent=1 // pred_fallthru
      _
    // Predicated region
    $region46: #{tpu_custom_call.1} parent=1 // pred_check
      _
    $region47: #{tpu_custom_call.1} parent=1 // pred_check_branch
      %317 = sbr.rel (0) target = $region49
    $region48: #{tpu_custom_call.1} parent=1 // pred_region
      %319 = dma.done [#allocation4], 128
    $region49: #{tpu_custom_call.1} parent=1 // pred_fallthru
      _
    %320 = vsyncpa [#allocation3], 1
    %321 = vsyncpa [#allocation4], 1

</llo_original>
